<compile_context>
chip_gen: v5e
topology: v5e:2x2
jax: 0.10.0
libtpu: 0.0.40
codegen_flags: <defaults>
</compile_context>

<pallas_src>
import functools

import jax
import jax.numpy as jnp
from jax.experimental import pallas as pl
from jax.experimental.pallas import tpu as pltpu


def _ipd_kernel(a_ref, b_ref, out_ref, *, approx):
    # a_ref  : (tm, D) row tile of inp
    # b_ref  : (tn, D) row tile of inp (acts as columns of inp.T)
    # out_ref: (tm, tn) sigmoid(inp @ inp.T) tile
    logits = jax.lax.dot_general(
        a_ref[...], b_ref[...],
        dimension_numbers=(((1,), (1,)), ((), ())),   # contract feature dims
        preferred_element_type=jnp.float32)
    e = jnp.exp(-logits)                               # EUP
    if approx:
        out = pl.reciprocal(1.0 + e, approx=True)     # EUP vrcp, nearly free
    else:
        out = 1.0 / (1.0 + e)                         # exact f32 sigmoid
    out_ref[...] = out.astype(out_ref.dtype)


def _clamp_tile(target, dim, align):
    """Largest legal tile: full dim if dim fits, else an `align`-multiple <= target."""
    if dim <= target:
        return dim                       # full-dim blocks are always legal
    return max(align, (target // align) * align)


def inner_product_decoder(inp, *, tm=512, tn=2048,
                          compute_dtype=None,
                          out_dtype=jnp.float32,
                          approx=False,
                          dropout=0.0, training=False):
    """sigmoid(inp @ inp.T).

    dropout with p=0.0 (module default) or eval mode is an identity.
    Set out_dtype=jnp.bfloat16 / approx=True for a faster, slightly lower
    precision output (edge probabilities in [0, 1]).
    """
    if dropout != 0.0 and training:
        raise NotImplementedError(
            "InnerProductDecoder Pallas kernel: dropout>0 in training mode "
            "is not implemented (module default is p=0.0).")

    N, D = inp.shape
    x = inp if compute_dtype is None else inp.astype(compute_dtype)
    cdt = x.dtype

    # Sublane packing: f32 -> 8, bf16 -> 16, int8/fp8 -> 32.
    sub = {4: 8, 2: 16, 1: 32}.get(jnp.dtype(cdt).itemsize, 8)
    tm_eff = _clamp_tile(tm, N, sub)     # output rows / lhs rows
    tn_eff = _clamp_tile(tn, N, 128)     # output cols (lane-dense) / rhs rows

    grid = (pl.cdiv(N, tm_eff), pl.cdiv(N, tn_eff))   # j (cols) is innermost

    in_bytes = jnp.dtype(cdt).itemsize
    out_bytes = jnp.dtype(out_dtype).itemsize
    # Double-buffered inputs + output tile, with headroom; cap fits v7x (64 MiB/TC).
    est = 2 * (tm_eff + tn_eff) * D * in_bytes + 2 * tm_eff * tn_eff * out_bytes
    vmem_limit = min(max(int(est * 1.5) + (4 << 20), 32 << 20), 48 << 20)

    kernel = functools.partial(_ipd_kernel, approx=approx)

    return pl.pallas_call(
        kernel,
        out_shape=jax.ShapeDtypeStruct((N, N), out_dtype),
        grid_spec=pltpu.PrefetchScalarGridSpec(
            num_scalar_prefetch=0,
            grid=grid,
            in_specs=[
                pl.BlockSpec((tm_eff, D), lambda i, j: (i, 0)),   # lhs row tile
                pl.BlockSpec((tn_eff, D), lambda i, j: (j, 0)),   # rhs row tile
            ],
            out_specs=pl.BlockSpec((tm_eff, tn_eff), lambda i, j: (i, j)),
        ),
        compiler_params=pltpu.CompilerParams(
            dimension_semantics=("parallel", "parallel"),
            vmem_limit_bytes=vmem_limit,
        ),
    )(x, x)


if __name__ == "__main__":
    key = jax.random.PRNGKey(0)

    # Small shapes consistent with the module: N graph nodes, D-dim embeddings.
    N, D = 64, 32
    inp = jax.random.normal(key, (N, D), dtype=jnp.float32)
    ref = jax.nn.sigmoid(inp @ inp.T)

    # Exact f32 path (matches PyTorch numerics).
    out = jax.block_until_ready(inner_product_decoder(inp))
    assert out.shape == (N, N)
    assert jnp.allclose(out, ref, atol=1e-5, rtol=1e-5), "f32 path mismatch"

    # Non-tile-multiple N (exercises full-dim blocks / masked edge stores).
    N2 = 72
    inp2 = jax.random.normal(jax.random.PRNGKey(1), (N2, D), dtype=jnp.float32)
    ref2 = jax.nn.sigmoid(inp2 @ inp2.T)
    out2 = jax.block_until_ready(inner_product_decoder(inp2))
    assert out2.shape == (N2, N2)
    assert jnp.allclose(out2, ref2, atol=1e-5, rtol=1e-5), "ragged-N path mismatch"

    # Fast path: bf16 output + approx (EUP) reciprocal for the sigmoid.
    out_fast = jax.block_until_ready(
        inner_product_decoder(inp, out_dtype=jnp.bfloat16, approx=True))
    assert jnp.allclose(out_fast.astype(jnp.float32), ref, atol=2e-2, rtol=0), \
        "bf16/approx path mismatch"

    # Multi-tile grid with a partial last row block (600 rows, tm=512).
    N3 = 600
    inp3 = jax.random.normal(jax.random.PRNGKey(2), (N3, D), dtype=jnp.float32)
    ref3 = jax.nn.sigmoid(inp3 @ inp3.T)
    out3 = jax.block_until_ready(inner_product_decoder(inp3))
    assert out3.shape == (N3, N3)
    assert jnp.allclose(out3, ref3, atol=1e-5, rtol=1e-5), "multi-tile path mismatch"

    print("KERNEL_OK")
</pallas_src>

<mosaic_0001>
module attributes {stable_mosaic.version = 11 : i64} {
  func.func @_ipd_kernel(%arg0: i32, %arg1: i32, %arg2: memref<64x32xf32, #tpu.memory_space<vmem>>, %arg3: memref<64x32xf32, #tpu.memory_space<vmem>>, %arg4: memref<64x64xf32, #tpu.memory_space<vmem>>) attributes {dimension_semantics = [#tpu.dimension_semantics<parallel>, #tpu.dimension_semantics<parallel>], iteration_bounds = array<i64: 1, 1>, scalar_prefetch = 0 : i64, scratch_operands = 0 : i64, tpu.core_type = #tpu.core_type<tc>, window_params = [{transform_indices = @transform_0, window_bounds = array<i64: 64, 32>}, {transform_indices = @transform_1, window_bounds = array<i64: 64, 32>}, {transform_indices = @transform_2, window_bounds = array<i64: 64, 64>}]} {
    %c0 = arith.constant 0 : index
    %c0_0 = arith.constant 0 : index
    %0 = vector.load %arg2[%c0, %c0_0] : memref<64x32xf32, #tpu.memory_space<vmem>>, vector<64x32xf32>
    %c0_1 = arith.constant 0 : index
    %c0_2 = arith.constant 0 : index
    %1 = vector.load %arg3[%c0_1, %c0_2] : memref<64x32xf32, #tpu.memory_space<vmem>>, vector<64x32xf32>
    %cst = arith.constant dense<0.000000e+00> : vector<64x64xf32>
    %2 = tpu.matmul %0, %1, %cst {dimension_numbers = #tpu.dot_dimension_numbers<[1], [1], [0], [0], [0, 0, 1, 0], [], []>} : vector<64x32xf32>, vector<64x32xf32>, vector<64x64xf32> -> vector<64x64xf32>
    %cst_3 = arith.constant 0.000000e+00 : f32
    %3 = vector.broadcast %cst_3 : f32 to vector<64x64xf32>
    %4 = arith.subf %3, %2 : vector<64x64xf32>
    %5 = math.exp %4 : vector<64x64xf32>
    %cst_4 = arith.constant 1.000000e+00 : f32
    %6 = vector.broadcast %cst_4 : f32 to vector<64x64xf32>
    %7 = arith.addf %6, %5 : vector<64x64xf32>
    %cst_5 = arith.constant 1.000000e+00 : f32
    %8 = vector.broadcast %cst_5 : f32 to vector<64x64xf32>
    %9 = arith.divf %8, %7 : vector<64x64xf32>
    %c0_6 = arith.constant 0 : index
    %c0_7 = arith.constant 0 : index
    %10 = vector.load %arg4[%c0_6, %c0_7] : memref<64x64xf32, #tpu.memory_space<vmem>>, vector<64x64xf32>
    tpu.vector_store %arg4[%c0_6, %c0_7], %9 {strides = array<i32>} : memref<64x64xf32, #tpu.memory_space<vmem>>, vector<64x64xf32>,
    return
  }
  func.func @transform_0(%arg0: i32, %arg1: i32) -> (i32, i32) {
    %c0_i32 = arith.constant 0 : i32
    %c0_i32_0 = arith.constant 0 : i32
    return %arg0, %c0_i32 : i32, i32
  }
  func.func @transform_1(%arg0: i32, %arg1: i32) -> (i32, i32) {
    %c0_i32 = arith.constant 0 : i32
    %c0_i32_0 = arith.constant 0 : i32
    return %arg1, %c0_i32 : i32, i32
  }
  func.func @transform_2(%arg0: i32, %arg1: i32) -> (i32, i32) {
    %c0_i32 = arith.constant 0 : i32
    return %arg0, %arg1 : i32, i32
  }
}

</mosaic_0001>

<llo_original>
// kernel: tpu_custom_call.1
$region0: #{tpu_custom_call.1}
  #allocation0 [shape = 'u32[]', space=smem, size = 0x4, offset = 0x4, fixed_abs, tag = 'smem constant byte address 0x4 - core index']
  #allocation1 [shape = 'u32[72,128]{1,0:T(1,128)}', space=vmem, size = 0x9000, scoped, tag = 'internal scratch']
  %s0 = inlined_call_operand.vmem [shape: f32[64,32], index: 0, kind: input, shape index: {}]
  %s1 = inlined_call_operand.vmem [shape: f32[64,32], index: 1, kind: input, shape index: {}]
  %s2 = inlined_call_operand.hbm [shape: f32[64,64], index: 2, kind: output, shape index: {}]
  %s3 = sld [smem:[#allocation0]]
  $region18: #{tpu_custom_call.1} parent=0
    _
  %s5 = ssub.s32 1, %s3
  %s6 = scalar_select 0, %s5, %s3
  $region1: #{tpu_custom_call.1} parent=0
    #allocation2 [shape = 'u8[32768]{0}', space=vmem, size = 0x8000, scoped, tag = 'output window, operand 0, single buffered']
    #allocation3 [shape = 's32[1]{0}', space=sflag, size = 0x4, scoped, tag = 'scoped memory for tpu_custom_call.1']
    %7 = vsyncpa [#allocation3], 0
    // Predicated region
    $region2: #{tpu_custom_call.1} parent=1 // pred_check
      _
    $region3: #{tpu_custom_call.1} parent=1 // pred_check_branch
      %9 = sbr.rel (0) target = $region5
    $region4: #{tpu_custom_call.1} parent=1 // pred_region
      _
    $region5: #{tpu_custom_call.1} parent=1 // pred_fallthru
      _
    // Predicated region
    $region6: #{tpu_custom_call.1} parent=1 // pred_check
      _
    $region7: #{tpu_custom_call.1} parent=1 // pred_check_branch
      %11 = sbr.rel (0) target = $region9
    $region8: #{tpu_custom_call.1} parent=1 // pred_region
      _
    $region9: #{tpu_custom_call.1} parent=1 // pred_fallthru
      _
    %v12 = vld [vmem:[%s0] sm:$0xff]
    %v13 = vld [vmem:[%s0 + $0x8] sm:$0xff]
    %v14 = vld [vmem:[%s0 + $0x10] sm:$0xff]
    %v15 = vld [vmem:[%s0 + $0x18] sm:$0xff]
    %v16 = vld [vmem:[%s0 + $0x20] sm:$0xff]
    %v17 = vld [vmem:[%s0 + $0x28] sm:$0xff]
    %v18 = vld [vmem:[%s0 + $0x30] sm:$0xff]
    %v19 = vld [vmem:[%s0 + $0x38] sm:$0xff]
    %v20 = vld [vmem:[%s1] sm:$0xff]
    %v21 = vld [vmem:[%s1 + $0x8] sm:$0xff]
    %v22 = vld [vmem:[%s1 + $0x10] sm:$0xff]
    %v23 = vld [vmem:[%s1 + $0x18] sm:$0xff]
    %v24 = vld [vmem:[%s1 + $0x20] sm:$0xff]
    %v25 = vld [vmem:[%s1 + $0x28] sm:$0xff]
    %v26 = vld [vmem:[%s1 + $0x30] sm:$0xff]
    %v27 = vld [vmem:[%s1 + $0x38] sm:$0xff]
    %vm28 = vcmask 261120
    %v30 = vsel %vm28, %v12, 0
    %v33 = vsel %vm28, %v13, 0
    %v36 = vsel %vm28, %v14, 0
    %v39 = vsel %vm28, %v15, 0
    %v42 = vsel %vm28, %v16, 0
    %v45 = vsel %vm28, %v17, 0
    %v48 = vsel %vm28, %v18, 0
    %v51 = vsel %vm28, %v19, 0
    %v54 = vsel %vm28, %v20, 0
    %v57 = vsel %vm28, %v21, 0
    %v60 = vsel %vm28, %v22, 0
    %v63 = vsel %vm28, %v23, 0
    %v66 = vsel %vm28, %v24, 0
    %v69 = vsel %vm28, %v25, 0
    %v72 = vsel %vm28, %v26, 0
    %v75 = vsel %vm28, %v27, 0
    %77 = vmatpush.xpose.msra.mxu0 0.0
    %78 = vmatpush.xpose.msra.mxu0 0.0
    %79 = vmatpush.xpose.msra.mxu0 0.0
    %80 = vmatpush.xpose.msra.mxu0 0.0
    %81 = vmatpush.xpose.msra.mxu0 0.0
    %82 = vmatpush.xpose.msra.mxu0 0.0
    %83 = vmatpush.xpose.msra.mxu0 0.0
    %84 = vmatpush.xpose.msra.mxu0 0.0
    %85 = vmatpush.xpose.msra.mxu0 %v75
    %86 = vmatpush.xpose.msra.mxu0 %v72
    %87 = vmatpush.xpose.msra.mxu0 %v69
    %88 = vmatpush.xpose.msra.mxu0 %v66
    %89 = vmatpush.xpose.msra.mxu0 %v63
    %90 = vmatpush.xpose.msra.mxu0 %v60
    %91 = vmatpush.xpose.msra.mxu0 %v57
    %92 = vmatpush.xpose.msra.mxu0 %v54
    %93 = vmatmul.f32.gmra.mxu0 %v30
    %v94 = vpop.f32.mrf.mxu0
    %v95 = vadd.f32 0.0, %v94
    %96 = vmatmul.f32.gmra.mxu0 %v33
    %v97 = vpop.f32.mrf.mxu0
    %v98 = vadd.f32 0.0, %v97
    %99 = vmatmul.f32.gmra.mxu0 %v36
    %v100 = vpop.f32.mrf.mxu0
    %v101 = vadd.f32 0.0, %v100
    %102 = vmatmul.f32.gmra.mxu0 %v39
    %v103 = vpop.f32.mrf.mxu0
    %v104 = vadd.f32 0.0, %v103
    %105 = vmatmul.f32.gmra.mxu0 %v42
    %v106 = vpop.f32.mrf.mxu0
    %v107 = vadd.f32 0.0, %v106
    %108 = vmatmul.f32.gmra.mxu0 %v45
    %v109 = vpop.f32.mrf.mxu0
    %v110 = vadd.f32 0.0, %v109
    %111 = vmatmul.f32.gmra.mxu0 %v48
    %v112 = vpop.f32.mrf.mxu0
    %v113 = vadd.f32 0.0, %v112
    %114 = vmatmul.f32.gmra.mxu0 %v51
    %v115 = vpop.f32.mrf.mxu0
    %v116 = vadd.f32 0.0, %v115
    %117 = vdwg.mxu0
    %v118 = vsub.f32 0.0, %v95
    %v119 = vsub.f32 0.0, %v98
    %v120 = vsub.f32 0.0, %v101
    %v121 = vsub.f32 0.0, %v104
    %v122 = vsub.f32 0.0, %v107
    %v123 = vsub.f32 0.0, %v110
    %v124 = vsub.f32 0.0, %v113
    %v125 = vsub.f32 0.0, %v116
    %v126 = vmul.f32 %v118, 1.442695
    %v127 = vpow.pop %v126
    %v128 = vmul.f32 %v119, 1.442695
    %v129 = vpow.pop %v128
    %v130 = vmul.f32 %v120, 1.442695
    %v131 = vpow.pop %v130
    %v132 = vmul.f32 %v121, 1.442695
    %v133 = vpow.pop %v132
    %v134 = vmul.f32 %v122, 1.442695
    %v135 = vpow.pop %v134
    %v136 = vmul.f32 %v123, 1.442695
    %v137 = vpow.pop %v136
    %v138 = vmul.f32 %v124, 1.442695
    %v139 = vpow.pop %v138
    %v140 = vmul.f32 %v125, 1.442695
    %v141 = vpow.pop %v140
    %v142 = vadd.f32 %v127, 1.0
    %v143 = vadd.f32 %v129, 1.0
    %v144 = vadd.f32 %v131, 1.0
    %v145 = vadd.f32 %v133, 1.0
    %v146 = vadd.f32 %v135, 1.0
    %v147 = vadd.f32 %v137, 1.0
    %v148 = vadd.f32 %v139, 1.0
    %v149 = vadd.f32 %v141, 1.0
    %v150 = vrcp.pop %v142
    %v151 = vmul.f32 %v142, %v150
    %v152 = vsub.f32 1.0, %v151
    %v153 = vmul.f32 %v150, %v152
    %v154 = vadd.f32 %v150, %v153
    %vm155 = vweird.f32 %v142
    %vm156 = vweird.f32 %v150
    %vm157 = vmor %vm155, %vm156
    %v158 = vsel %vm157, %v150, %v154
    %v159 = vand.u32 2147483647, %v142
    %vm160 = vcmp.eq.f32.partialorder %v159, 8.507059e+37
    %v161 = vand.u32 %v142, 2147483648
    %v162 = vor.u32 1.1754944e-38, %v161
    %v163 = vsel %vm160, %v162, %v158
    %v164 = vmul.f32 1.0, %v163
    %v165 = vrcp.pop %v143
    %v166 = vmul.f32 %v143, %v165
    %v167 = vsub.f32 1.0, %v166
    %v168 = vmul.f32 %v165, %v167
    %v169 = vadd.f32 %v165, %v168
    %vm170 = vweird.f32 %v143
    %vm171 = vweird.f32 %v165
    %vm172 = vmor %vm170, %vm171
    %v173 = vsel %vm172, %v165, %v169
    %v174 = vand.u32 2147483647, %v143
    %vm175 = vcmp.eq.f32.partialorder %v174, 8.507059e+37
    %v176 = vand.u32 %v143, 2147483648
    %v177 = vor.u32 1.1754944e-38, %v176
    %v178 = vsel %vm175, %v177, %v173
    %v179 = vmul.f32 1.0, %v178
    %v180 = vrcp.pop %v144
    %v181 = vmul.f32 %v144, %v180
    %v182 = vsub.f32 1.0, %v181
    %v183 = vmul.f32 %v180, %v182
    %v184 = vadd.f32 %v180, %v183
    %vm185 = vweird.f32 %v144
    %vm186 = vweird.f32 %v180
    %vm187 = vmor %vm185, %vm186
    %v188 = vsel %vm187, %v180, %v184
    %v189 = vand.u32 2147483647, %v144
    %vm190 = vcmp.eq.f32.partialorder %v189, 8.507059e+37
    %v191 = vand.u32 %v144, 2147483648
    %v192 = vor.u32 1.1754944e-38, %v191
    %v193 = vsel %vm190, %v192, %v188
    %v194 = vmul.f32 1.0, %v193
    %v195 = vrcp.pop %v145
    %v196 = vmul.f32 %v145, %v195
    %v197 = vsub.f32 1.0, %v196
    %v198 = vmul.f32 %v195, %v197
    %v199 = vadd.f32 %v195, %v198
    %vm200 = vweird.f32 %v145
    %vm201 = vweird.f32 %v195
    %vm202 = vmor %vm200, %vm201
    %v203 = vsel %vm202, %v195, %v199
    %v204 = vand.u32 2147483647, %v145
    %vm205 = vcmp.eq.f32.partialorder %v204, 8.507059e+37
    %v206 = vand.u32 %v145, 2147483648
    %v207 = vor.u32 1.1754944e-38, %v206
    %v208 = vsel %vm205, %v207, %v203
    %v209 = vmul.f32 1.0, %v208
    %v210 = vrcp.pop %v146
    %v211 = vmul.f32 %v146, %v210
    %v212 = vsub.f32 1.0, %v211
    %v213 = vmul.f32 %v210, %v212
    %v214 = vadd.f32 %v210, %v213
    %vm215 = vweird.f32 %v146
    %vm216 = vweird.f32 %v210
    %vm217 = vmor %vm215, %vm216
    %v218 = vsel %vm217, %v210, %v214
    %v219 = vand.u32 2147483647, %v146
    %vm220 = vcmp.eq.f32.partialorder %v219, 8.507059e+37
    %v221 = vand.u32 %v146, 2147483648
    %v222 = vor.u32 1.1754944e-38, %v221
    %v223 = vsel %vm220, %v222, %v218
    %v224 = vmul.f32 1.0, %v223
    %v225 = vrcp.pop %v147
    %v226 = vmul.f32 %v147, %v225
    %v227 = vsub.f32 1.0, %v226
    %v228 = vmul.f32 %v225, %v227
    %v229 = vadd.f32 %v225, %v228
    %vm230 = vweird.f32 %v147
    %vm231 = vweird.f32 %v225
    %vm232 = vmor %vm230, %vm231
    %v233 = vsel %vm232, %v225, %v229
    %v234 = vand.u32 2147483647, %v147
    %vm235 = vcmp.eq.f32.partialorder %v234, 8.507059e+37
    %v236 = vand.u32 %v147, 2147483648
    %v237 = vor.u32 1.1754944e-38, %v236
    %v238 = vsel %vm235, %v237, %v233
    %v239 = vmul.f32 1.0, %v238
    %v240 = vrcp.pop %v148
    %v241 = vmul.f32 %v148, %v240
    %v242 = vsub.f32 1.0, %v241
    %v243 = vmul.f32 %v240, %v242
    %v244 = vadd.f32 %v240, %v243
    %vm245 = vweird.f32 %v148
    %vm246 = vweird.f32 %v240
    %vm247 = vmor %vm245, %vm246
    %v248 = vsel %vm247, %v240, %v244
    %v249 = vand.u32 2147483647, %v148
    %vm250 = vcmp.eq.f32.partialorder %v249, 8.507059e+37
    %v251 = vand.u32 %v148, 2147483648
    %v252 = vor.u32 1.1754944e-38, %v251
    %v253 = vsel %vm250, %v252, %v248
    %v254 = vmul.f32 1.0, %v253
    %v255 = vrcp.pop %v149
    %v256 = vmul.f32 %v149, %v255
    %v257 = vsub.f32 1.0, %v256
    %v258 = vmul.f32 %v255, %v257
    %v259 = vadd.f32 %v255, %v258
    %vm260 = vweird.f32 %v149
    %vm261 = vweird.f32 %v255
    %vm262 = vmor %vm260, %vm261
    %v263 = vsel %vm262, %v255, %v259
    %v264 = vand.u32 2147483647, %v149
    %vm265 = vcmp.eq.f32.partialorder %v264, 8.507059e+37
    %v266 = vand.u32 %v149, 2147483648
    %v267 = vor.u32 1.1754944e-38, %v266
    %v268 = vsel %vm265, %v267, %v263
    %v269 = vmul.f32 1.0, %v268
    %vm270 = vcmask 523264
    %271 = vst.msk [vmem:[#allocation2] sm:$0xff] %vm270, %v164
    %272 = vst.msk [vmem:[#allocation2 + $0x8] sm:$0xff] %vm270, %v179
    %273 = vst.msk [vmem:[#allocation2 + $0x10] sm:$0xff] %vm270, %v194
    %274 = vst.msk [vmem:[#allocation2 + $0x18] sm:$0xff] %vm270, %v209
    %275 = vst.msk [vmem:[#allocation2 + $0x20] sm:$0xff] %vm270, %v224
    %276 = vst.msk [vmem:[#allocation2 + $0x28] sm:$0xff] %vm270, %v239
    %277 = vst.msk [vmem:[#allocation2 + $0x30] sm:$0xff] %vm270, %v254
    %278 = vst.msk [vmem:[#allocation2 + $0x38] sm:$0xff] %vm270, %v269
    // Predicated region
    $region10: #{tpu_custom_call.1} parent=1 // pred_check
      _
    $region11: #{tpu_custom_call.1} parent=1 // pred_check_branch
      %280 = sbr.rel (0) target = $region13
    $region12: #{tpu_custom_call.1} parent=1 // pred_region
      %282 = vsyncadd [#allocation3], 0
      %s283 = sshll.u32 [#allocation2], 4
      %s284 = int_to_ptr.vmem [resolvable:$true] %s283
      %s285 = sshll.u32 %s2, 4
      %s286 = int_to_ptr.hbm [resolvable:$true] %s285
      %291 = dma.vmem_to_hbm [thread:$0]  %s284, 1024, %s286, [#allocation3], 128, 128, 8
    $region13: #{tpu_custom_call.1} parent=1 // pred_fallthru
      _
    // Predicated region
    $region14: #{tpu_custom_call.1} parent=1 // pred_check
      _
    $region15: #{tpu_custom_call.1} parent=1 // pred_check_branch
      %293 = sbr.rel (0) target = $region17
    $region16: #{tpu_custom_call.1} parent=1 // pred_region
      %295 = dma.done [#allocation3], 1024
    $region17: #{tpu_custom_call.1} parent=1 // pred_fallthru
      _
    %296 = vsyncpa [#allocation3], 1

</llo_original>
